<compile_context>
chip_gen: v7x
topology: tpu7x:2x2x1
jax: 0.10.0
libtpu: 0.0.40
codegen_flags: <defaults>
</compile_context>

<pallas_src>
import functools
from typing import NamedTuple, Optional

import jax
import jax.numpy as jnp
from jax.experimental import pallas as pl
from jax.experimental.pallas import tpu as pltpu


def _round_up(x: int, m: int) -> int:
    return ((x + m - 1) // m) * m


def _divisor_tile(total: int, upper: int) -> int:
    """Largest multiple of 128 <= upper that divides `total` (total % 128 == 0)."""
    upper = max(128, (min(upper, total) // 128) * 128)
    for t in range(upper, 127, -128):
        if total % t == 0:
            return t
    return 128


@functools.lru_cache(maxsize=1)
def _tpu_info():
    """(per-core VMEM capacity bytes, #TensorCores) with conservative fallbacks."""
    vmem_cap = 64 * 2**20           # v7x per-TC VMEM; safe lower bound everywhere
    n_cores = 1
    try:
        info = pltpu.get_tpu_info()
        cap = getattr(info, "vmem_capacity_bytes", None)
        if cap:
            vmem_cap = int(cap)
        for name in ("num_cores", "num_tensorcores", "cores_per_chip",
                     "tensorcore_count", "num_cores_per_chip"):
            v = getattr(info, name, None)
            if v:
                n_cores = int(v)
                break
    except Exception:
        pass
    return vmem_cap, n_cores


# ----------------------------------------------------------------------------
# Kernels
# ----------------------------------------------------------------------------
def _crosscoder_kernel_accout(x_ref, wenc_ref, benc_ref, wdec_ref, bdec_ref, r_ref):
    """f32 output: accumulate directly into the VMEM-resident output tile."""
    k = pl.program_id(1)

    @pl.when(k == 0)
    def _init():
        r_ref[...] = jnp.broadcast_to(bdec_ref[...].astype(jnp.float32), r_ref.shape)

    acts = jnp.dot(x_ref[...], wenc_ref[...], preferred_element_type=jnp.float32)
    acts = jnp.maximum(acts + benc_ref[...].astype(jnp.float32), 0.0)
    r_ref[...] += jnp.dot(acts.astype(wdec_ref.dtype), wdec_ref[...],
                          preferred_element_type=jnp.float32)


def _crosscoder_kernel_scratch(x_ref, wenc_ref, benc_ref, wdec_ref, bdec_ref,
                               r_ref, acc_ref):
    """Non-f32 output: accumulate in an f32 VMEM scratch, cast once at the end."""
    k = pl.program_id(1)

    @pl.when(k == 0)
    def _init():
        acc_ref[...] = jnp.zeros_like(acc_ref)

    acts = jnp.dot(x_ref[...], wenc_ref[...], preferred_element_type=jnp.float32)
    acts = jnp.maximum(acts + benc_ref[...].astype(jnp.float32), 0.0)
    acc_ref[...] += jnp.dot(acts.astype(wdec_ref.dtype), wdec_ref[...],
                            preferred_element_type=jnp.float32)

    @pl.when(k == pl.num_programs(1) - 1)
    def _finish():
        r_ref[...] = (acc_ref[...] + bdec_ref[...].astype(jnp.float32)
                      ).astype(r_ref.dtype)


# ----------------------------------------------------------------------------
# One-time parameter preparation (hoisted out of the per-call path)
# ----------------------------------------------------------------------------
class CrossCoderParams(NamedTuple):
    W_enc: jax.Array     # [d_in_p, d_hidden_p], compute dtype
    b_enc: jax.Array     # [1, d_hidden_p], f32
    W_dec: jax.Array     # [d_hidden_p, d_in_p], compute dtype
    b_dec: jax.Array     # [1, d_in_p], f32
    d_in_A: int
    d_in_B: int
    d_hidden: int


def prepare_params(W_enc_A, W_enc_B, b_enc, W_dec_A, W_dec_B, b_dec_A, b_dec_B,
                   compute_dtype: Optional[jnp.dtype] = None) -> CrossCoderParams:
    """Fuse A/B streams and pad to lane-friendly sizes ONCE (not per forward)."""
    d_in_A, d_hidden = W_enc_A.shape
    d_in_B = W_enc_B.shape[0]
    d_in = d_in_A + d_in_B
    d_in_p = _round_up(d_in, 128)
    d_hidden_p = _round_up(d_hidden, 128)
    cdt = jnp.dtype(compute_dtype) if compute_dtype is not None else W_enc_A.dtype

    W_enc = jnp.concatenate([W_enc_A, W_enc_B], axis=0).astype(cdt)
    W_dec = jnp.concatenate([W_dec_A, W_dec_B], axis=1).astype(cdt)
    W_enc = jnp.pad(W_enc, ((0, d_in_p - d_in), (0, d_hidden_p - d_hidden)))
    W_dec = jnp.pad(W_dec, ((0, d_hidden_p - d_hidden), (0, d_in_p - d_in)))
    b_enc_p = jnp.pad(b_enc.astype(jnp.float32),
                      (0, d_hidden_p - d_hidden)).reshape(1, d_hidden_p)
    b_dec = jnp.concatenate([b_dec_A, b_dec_B], axis=0).astype(jnp.float32)
    b_dec_p = jnp.pad(b_dec, (0, d_in_p - d_in)).reshape(1, d_in_p)
    return CrossCoderParams(W_enc, b_enc_p, W_dec, b_dec_p, d_in_A, d_in_B, d_hidden)


# ----------------------------------------------------------------------------
# Tile selection (VMEM-budget / generation aware)
# ----------------------------------------------------------------------------
def _select_tiles(B, d_in_p, d_hidden_p, batch_tile, hidden_tile,
                  compute_itemsize, out_itemsize, needs_scratch):
    vmem_cap, n_cores = _tpu_info()
    budget = max(vmem_cap - 8 * 2**20, 16 * 2**20)      # headroom below capacity

    th = _divisor_tile(d_hidden_p, max(128, hidden_tile))
    B8 = _round_up(B, 8)
    tb = min(_round_up(max(batch_tile, 8), 8), B8)
    if n_cores >= 2 and B8 >= 16:
        # keep >= 2 batch tiles so the "parallel" axis spans both TensorCores (v7x)
        tb = min(tb, _round_up((B8 + 1) // 2, 8))

    def need(tb_, th_):
        n = 2 * tb_ * d_in_p * compute_itemsize           # x tile, double-buffered
        n += 2 * 2 * th_ * d_in_p * compute_itemsize      # W_enc + W_dec tiles
        n += 2 * 8 * (th_ + d_in_p) * 4                   # bias tiles (8-sublane padded)
        n += 2 * tb_ * d_in_p * out_itemsize              # output tile
        if needs_scratch:
            n += tb_ * d_in_p * 4                         # f32 accumulator scratch
        return n

    while need(tb, th) > budget:
        if th > 512:                                       # keep th >= 512 if possible
            th = _divisor_tile(d_hidden_p, th - 128)
        elif tb > 256:
            tb = _round_up(max(tb // 2, 256), 8)
        elif th > 128:
            th = _divisor_tile(d_hidden_p, th - 128)
        elif tb > 8:
            tb = _round_up(max(tb // 2, 8), 8)
        else:
            break

    vmem_limit = int(min(vmem_cap - 4 * 2**20,
                         max(need(tb, th) * 5 // 4, 32 * 2**20)))
    return tb, th, vmem_limit


# ----------------------------------------------------------------------------
# Forward
# ----------------------------------------------------------------------------
@functools.partial(jax.jit,
                   static_argnames=("d_in_A", "tb", "th", "vmem_limit_bytes"))
def _forward_impl(xA, xB, W_enc_p, b_enc_p, W_dec_p, b_dec_p, *,
                  d_in_A, tb, th, vmem_limit_bytes):
    B = xA.shape[0]
    d_in_B = xB.shape[1]
    d_in = d_in_A + d_in_B
    d_in_p, d_hidden_p = W_enc_p.shape
    compute_dtype = W_enc_p.dtype
    out_dtype = xA.dtype

    # Cheap per-call activation prep (weights are prepared once elsewhere).
    B_p = _round_up(B, tb)
    x = jnp.concatenate([xA.astype(compute_dtype), xB.astype(compute_dtype)], axis=1)
    x_p = jnp.pad(x, ((0, B_p - B), (0, d_in_p - d_in)))

    grid = (B_p // tb, d_hidden_p // th)

    if out_dtype == jnp.float32:
        kernel = _crosscoder_kernel_accout
        scratch_shapes = []
        r_dtype = jnp.float32
    else:
        kernel = _crosscoder_kernel_scratch
        scratch_shapes = [pltpu.VMEM((tb, d_in_p), jnp.float32)]
        r_dtype = out_dtype

    # Advisory cost estimate: weights are re-streamed once per batch tile.
    cbytes = jnp.dtype(compute_dtype).itemsize
    obytes = jnp.dtype(r_dtype).itemsize
    n_btiles = grid[0]
    flops = 4 * B_p * d_in_p * d_hidden_p
    weight_bytes = ((W_enc_p.size + W_dec_p.size) * cbytes
                    + (b_enc_p.size + b_dec_p.size) * 4)
    bytes_accessed = (x_p.size * cbytes + B_p * d_in_p * obytes
                      + n_btiles * weight_bytes)
    cost = pl.CostEstimate(flops=int(flops), transcendentals=0,
                           bytes_accessed=int(bytes_accessed))

    r = pl.pallas_call(
        kernel,
        out_shape=jax.ShapeDtypeStruct((B_p, d_in_p), r_dtype),
        grid_spec=pltpu.PrefetchScalarGridSpec(
            num_scalar_prefetch=0,
            grid=grid,
            in_specs=[
                pl.BlockSpec((tb, d_in_p), lambda i, k: (i, 0)),   # x (batch tile)
                pl.BlockSpec((d_in_p, th), lambda i, k: (0, k)),   # W_enc[:, k]
                pl.BlockSpec((1, th), lambda i, k: (0, k)),        # b_enc[k]
                pl.BlockSpec((th, d_in_p), lambda i, k: (k, 0)),   # W_dec[k, :]
                pl.BlockSpec((1, d_in_p), lambda i, k: (0, 0)),    # b_dec
            ],
            out_specs=pl.BlockSpec((tb, d_in_p), lambda i, k: (i, 0)),
            scratch_shapes=scratch_shapes,
        ),
        compiler_params=pltpu.CompilerParams(
            dimension_semantics=("parallel", "arbitrary"),
            vmem_limit_bytes=vmem_limit_bytes),
        cost_estimate=cost,
    )(x_p, W_enc_p, b_enc_p, W_dec_p, b_dec_p)

    rA = r[:B, :d_in_A].astype(out_dtype)
    rB = r[:B, d_in_A:d_in].astype(out_dtype)
    return rA, rB


def crosscoder_forward(xA, xB, params: CrossCoderParams, *,
                       batch_tile=1024, hidden_tile=1024):
    """Forward pass: (xA, xB) -> (reconstruction_A, reconstruction_B)."""
    B = xA.shape[0]
    d_in_p, d_hidden_p = params.W_enc.shape
    needs_scratch = (xA.dtype != jnp.float32)
    cbytes = jnp.dtype(params.W_enc.dtype).itemsize
    obytes = jnp.dtype(xA.dtype).itemsize if needs_scratch else 4
    tb, th, vmem_limit = _select_tiles(B, d_in_p, d_hidden_p, batch_tile,
                                       hidden_tile, cbytes, obytes, needs_scratch)
    return _forward_impl(xA, xB, params.W_enc, params.b_enc,
                         params.W_dec, params.b_dec,
                         d_in_A=params.d_in_A, tb=tb, th=th,
                         vmem_limit_bytes=vmem_limit)


# ----------------------------------------------------------------------------
# Test harness
# ----------------------------------------------------------------------------
def init_params(key, d_hidden, d_in_A, d_in_B, dec_init_norm, dtype=jnp.float32):
    """Deterministic init mirroring CrossCoderMultiscale.__init__."""
    kA, kB = jax.random.split(key)
    W_dec_A = jax.random.normal(kA, (d_hidden, d_in_A), dtype=dtype)
    W_dec_B = jax.random.normal(kB, (d_hidden, d_in_B), dtype=dtype)
    W_dec_A = W_dec_A / jnp.linalg.norm(W_dec_A, axis=1, keepdims=True) * dec_init_norm
    W_dec_B = W_dec_B / jnp.linalg.norm(W_dec_B, axis=1, keepdims=True) * dec_init_norm
    W_enc_A = W_dec_A.T
    W_enc_B = W_dec_B.T
    b_enc = jnp.zeros((d_hidden,), dtype=dtype)
    b_dec_A = jnp.zeros((d_in_A,), dtype=dtype)
    b_dec_B = jnp.zeros((d_in_B,), dtype=dtype)
    return W_enc_A, W_enc_B, b_enc, W_dec_A, W_dec_B, b_dec_A, b_dec_B


def reference_forward(xA, xB, W_enc_A, W_enc_B, b_enc,
                      W_dec_A, W_dec_B, b_dec_A, b_dec_B, compute_dtype=None):
    """Pure-JAX reference; mimics the kernel's compute-dtype casting."""
    cdt = jnp.dtype(compute_dtype) if compute_dtype is not None else xA.dtype
    eA = jnp.dot(xA.astype(cdt), W_enc_A.astype(cdt),
                 preferred_element_type=jnp.float32)
    eB = jnp.dot(xB.astype(cdt), W_enc_B.astype(cdt),
                 preferred_element_type=jnp.float32)
    acts = jax.nn.relu(eA + eB + b_enc.astype(jnp.float32))
    rA = jnp.dot(acts.astype(cdt), W_dec_A.astype(cdt),
                 preferred_element_type=jnp.float32) + b_dec_A.astype(jnp.float32)
    rB = jnp.dot(acts.astype(cdt), W_dec_B.astype(cdt),
                 preferred_element_type=jnp.float32) + b_dec_B.astype(jnp.float32)
    return rA.astype(xA.dtype), rB.astype(xA.dtype)


def _check(batch, d_in_A, d_in_B, d_hidden, batch_tile, hidden_tile, seed,
           compute_dtype=None, in_dtype=jnp.float32, atol=1e-4, rtol=1e-4):
    key = jax.random.PRNGKey(seed)
    kp, kxA, kxB = jax.random.split(key, 3)
    raw = init_params(kp, d_hidden, d_in_A, d_in_B, 0.1, dtype=jnp.float32)
    xA = jax.random.normal(kxA, (batch, d_in_A), dtype=jnp.float32).astype(in_dtype)
    xB = jax.random.normal(kxB, (batch, d_in_B), dtype=jnp.float32).astype(in_dtype)

    params = prepare_params(*raw, compute_dtype=compute_dtype)   # once per param set
    rA, rB = crosscoder_forward(xA, xB, params,
                                batch_tile=batch_tile, hidden_tile=hidden_tile)
    jax.block_until_ready((rA, rB))

    cdt = compute_dtype if compute_dtype is not None else raw[0].dtype
    rA_ref, rB_ref = reference_forward(xA, xB, *raw, compute_dtype=cdt)
    assert rA.shape == (batch, d_in_A) and rB.shape == (batch, d_in_B)
    assert rA.dtype == xA.dtype and rB.dtype == xB.dtype
    assert jnp.allclose(rA.astype(jnp.float32), rA_ref.astype(jnp.float32),
                        atol=atol, rtol=rtol)
    assert jnp.allclose(rB.astype(jnp.float32), rB_ref.astype(jnp.float32),
                        atol=atol, rtol=rtol)


if __name__ == "__main__":
    # Small single-tile config (f32 weights and activations).
    _check(batch=8, d_in_A=16, d_in_B=32, d_hidden=64,
           batch_tile=256, hidden_tile=512, seed=0)

    # Non-divisible shapes + multi-step grid: exercises batch tiling, hidden
    # accumulation in the output tile, and the padding/remainder path.
    _check(batch=24, d_in_A=24, d_in_B=40, d_hidden=300,
           batch_tile=8, hidden_tile=128, seed=0)

    # bf16 MXU compute with f32 accumulate-into-output (f32 inputs/outputs).
    _check(batch=16, d_in_A=32, d_in_B=32, d_hidden=256,
           batch_tile=8, hidden_tile=128, seed=1,
           compute_dtype=jnp.bfloat16, atol=5e-3, rtol=5e-2)

    # bf16 end-to-end (bf16 inputs/outputs): exercises the f32-scratch path.
    _check(batch=16, d_in_A=32, d_in_B=32, d_hidden=256,
           batch_tile=8, hidden_tile=128, seed=2,
           compute_dtype=jnp.bfloat16, in_dtype=jnp.bfloat16,
           atol=2e-2, rtol=2e-1)

    print("KERNEL_OK")
</pallas_src>

<mosaic_0001>
module attributes {stable_mosaic.version = 11 : i64} {
  func.func @_crosscoder_kernel_accout(%arg0: i32, %arg1: i32, %arg2: memref<8x128xf32, #tpu.memory_space<vmem>>, %arg3: memref<128x128xf32, #tpu.memory_space<vmem>>, %arg4: memref<1x128xf32, #tpu.memory_space<vmem>>, %arg5: memref<128x128xf32, #tpu.memory_space<vmem>>, %arg6: memref<1x128xf32, #tpu.memory_space<vmem>>, %arg7: memref<8x128xf32, #tpu.memory_space<vmem>>) attributes {dimension_semantics = [#tpu.dimension_semantics<parallel>, #tpu.dimension_semantics<arbitrary>], iteration_bounds = array<i64: 1, 1>, scalar_prefetch = 0 : i64, scratch_operands = 0 : i64, tpu.core_type = #tpu.core_type<tc>, window_params = [{transform_indices = @transform_0, window_bounds = array<i64: 8, 128>}, {transform_indices = @transform_1, window_bounds = array<i64: 128, 128>}, {transform_indices = @transform_2, window_bounds = array<i64: 1, 128>}, {transform_indices = @transform_3, window_bounds = array<i64: 128, 128>}, {pipeline_mode = #tpu.pipeline_mode<synchronous>, transform_indices = @transform_4, window_bounds = array<i64: 1, 128>}, {transform_indices = @transform_5, window_bounds = array<i64: 8, 128>}]} {
    %c0_i32 = arith.constant 0 : i32
    %0 = arith.cmpi eq, %arg1, %c0_i32 : i32
    %1 = arith.extui %0 : i1 to i32
    %c0_i32_0 = arith.constant 0 : i32
    %2 = arith.cmpi ne, %1, %c0_i32_0 : i32
    scf.if %2 {
      %c0_14 = arith.constant 0 : index
      %c0_15 = arith.constant 0 : index
      %16 = vector.load %arg6[%c0_14, %c0_15] : memref<1x128xf32, #tpu.memory_space<vmem>>, vector<1x128xf32>
      %17 = vector.shape_cast %16 : vector<1x128xf32> to vector<1x128xf32>
      %18 = vector.broadcast %17 : vector<1x128xf32> to vector<8x128xf32>
      %c0_16 = arith.constant 0 : index
      %c0_17 = arith.constant 0 : index
      %19 = vector.load %arg7[%c0_16, %c0_17] : memref<8x128xf32, #tpu.memory_space<vmem>>, vector<8x128xf32>
      tpu.vector_store %arg7[%c0_16, %c0_17], %18 {strides = array<i32>} : memref<8x128xf32, #tpu.memory_space<vmem>>, vector<8x128xf32>,
    } else {
    }
    %c0 = arith.constant 0 : index
    %c0_1 = arith.constant 0 : index
    %3 = vector.load %arg2[%c0, %c0_1] : memref<8x128xf32, #tpu.memory_space<vmem>>, vector<8x128xf32>
    %c0_2 = arith.constant 0 : index
    %c0_3 = arith.constant 0 : index
    %4 = vector.load %arg3[%c0_2, %c0_3] : memref<128x128xf32, #tpu.memory_space<vmem>>, vector<128x128xf32>
    %cst = arith.constant dense<0.000000e+00> : vector<8x128xf32>
    %5 = tpu.matmul %3, %4, %cst {dimension_numbers = #tpu.dot_dimension_numbers<[1], [0], [0], [1], [0, 0, 1, 1], [], []>} : vector<8x128xf32>, vector<128x128xf32>, vector<8x128xf32> -> vector<8x128xf32>
    %c0_4 = arith.constant 0 : index
    %c0_5 = arith.constant 0 : index
    %6 = vector.load %arg4[%c0_4, %c0_5] : memref<1x128xf32, #tpu.memory_space<vmem>>, vector<1x128xf32>
    %7 = vector.broadcast %6 : vector<1x128xf32> to vector<8x128xf32>
    %8 = arith.addf %5, %7 : vector<8x128xf32>
    %cst_6 = arith.constant 0.000000e+00 : f32
    %9 = vector.broadcast %cst_6 : f32 to vector<8x128xf32>
    %10 = arith.maximumf %8, %9 : vector<8x128xf32>
    %c0_7 = arith.constant 0 : index
    %c0_8 = arith.constant 0 : index
    %11 = vector.load %arg7[%c0_7, %c0_8] : memref<8x128xf32, #tpu.memory_space<vmem>>, vector<8x128xf32>
    %c0_9 = arith.constant 0 : index
    %c0_10 = arith.constant 0 : index
    %12 = vector.load %arg5[%c0_9, %c0_10] : memref<128x128xf32, #tpu.memory_space<vmem>>, vector<128x128xf32>
    %cst_11 = arith.constant dense<0.000000e+00> : vector<8x128xf32>
    %13 = tpu.matmul %10, %12, %cst_11 {dimension_numbers = #tpu.dot_dimension_numbers<[1], [0], [0], [1], [0, 0, 1, 1], [], []>} : vector<8x128xf32>, vector<128x128xf32>, vector<8x128xf32> -> vector<8x128xf32>
    %14 = arith.addf %11, %13 : vector<8x128xf32>
    %c0_12 = arith.constant 0 : index
    %c0_13 = arith.constant 0 : index
    %15 = vector.load %arg7[%c0_12, %c0_13] : memref<8x128xf32, #tpu.memory_space<vmem>>, vector<8x128xf32>
    tpu.vector_store %arg7[%c0_12, %c0_13], %14 {strides = array<i32>} : memref<8x128xf32, #tpu.memory_space<vmem>>, vector<8x128xf32>,
    return
  }
  func.func @transform_0(%arg0: i32, %arg1: i32) -> (i32, i32) {
    %c0_i32 = arith.constant 0 : i32
    %c0_i32_0 = arith.constant 0 : i32
    return %arg0, %c0_i32 : i32, i32
  }
  func.func @transform_1(%arg0: i32, %arg1: i32) -> (i32, i32) {
    %c0_i32 = arith.constant 0 : i32
    %c0_i32_0 = arith.constant 0 : i32
    return %c0_i32, %arg1 : i32, i32
  }
  func.func @transform_2(%arg0: i32, %arg1: i32) -> (i32, i32) {
    %c0_i32 = arith.constant 0 : i32
    %c0_i32_0 = arith.constant 0 : i32
    return %c0_i32, %arg1 : i32, i32
  }
  func.func @transform_3(%arg0: i32, %arg1: i32) -> (i32, i32) {
    %c0_i32 = arith.constant 0 : i32
    %c0_i32_0 = arith.constant 0 : i32
    return %arg1, %c0_i32 : i32, i32
  }
  func.func @transform_4(%arg0: i32, %arg1: i32) -> (i32, i32) {
    %c0_i32 = arith.constant 0 : i32
    %c0_i32_0 = arith.constant 0 : i32
    %c0_i32_1 = arith.constant 0 : i32
    return %c0_i32, %c0_i32_0 : i32, i32
  }
  func.func @transform_5(%arg0: i32, %arg1: i32) -> (i32, i32) {
    %c0_i32 = arith.constant 0 : i32
    %c0_i32_0 = arith.constant 0 : i32
    return %arg0, %c0_i32 : i32, i32
  }
}

</mosaic_0001>

<llo_original>
// kernel: _forward_impl.1
$region0: #{_forward_impl.1}
  #allocation0 [shape = 'u32[]', space=smem, size = 0x4, offset = 0x4, fixed_abs, tag = 'smem constant byte address 0x4 - core index']
  #allocation1 [shape = 'u32[144,128]{1,0:T(1,128)}', space=vmem, size = 0x12000, scoped, tag = 'internal scratch']
  %s0 = inlined_call_operand.vmem [shape: f32[8,128], index: 0, kind: input, shape index: {}]
  %s1 = inlined_call_operand.hbm [shape: f32[128,128], index: 1, kind: input, shape index: {}]
  %s2 = inlined_call_operand.vmem [shape: f32[1,128], index: 2, kind: input, shape index: {}]
  %s3 = inlined_call_operand.hbm [shape: f32[128,128], index: 3, kind: input, shape index: {}]
  %s4 = inlined_call_operand.vmem [shape: f32[1,128], index: 4, kind: input, shape index: {}]
  %s5 = inlined_call_operand.vmem [shape: f32[8,128], index: 5, kind: output, shape index: {}]
  %s6 = sld [smem:[#allocation0]]
  $region42: #{_forward_impl.1} parent=0
    _
  %s8 = ssub.s32 1, %s6
  %s9 = scalar_select 0, %s8, %s6
  $region1: #{_forward_impl.1} parent=0
    #allocation2 [shape = 'u8[65536]{0}', space=vmem, size = 0x10000, scoped, tag = 'input window, operand 1, single buffered']
    #allocation3 [shape = 's32[1]{0}', space=sflag, size = 0x4, scoped, tag = 'scoped memory for _forward_impl.1']
    #allocation4 [shape = 'u8[65536]{0}', space=vmem, size = 0x10000, scoped, tag = 'input window, operand 3, single buffered']
    #allocation5 [shape = 's32[1]{0}', space=sflag, size = 0x4, scoped, tag = 'scoped memory for _forward_impl.1']
    %10 = vsyncpa [#allocation3], 0
    %11 = vsyncpa [#allocation5], 0
    // Predicated region
    $region2: #{_forward_impl.1} parent=1 // pred_check
      _
    $region3: #{_forward_impl.1} parent=1 // pred_check_branch
      %13 = sbr.rel (0) target = $region5
    $region4: #{_forward_impl.1} parent=1 // pred_region
      _
    $region5: #{_forward_impl.1} parent=1 // pred_fallthru
      _
    // Predicated region
    $region6: #{_forward_impl.1} parent=1 // pred_check
      _
    $region7: #{_forward_impl.1} parent=1 // pred_check_branch
      %15 = sbr.rel (0) target = $region9
    $region8: #{_forward_impl.1} parent=1 // pred_region
      %s17 = ssub.s32 2048, 2048
      %18 = vsyncadd [#allocation3], %s17
      %s19 = sshll.u32 [#allocation2], 4
      %s20 = int_to_ptr.vmem [resolvable:$true] %s19
      %25 = dma.hbm_to_vmem [thread:$0]  %s1, 2048, %s20, [#allocation3], 128, 128, 8
    $region9: #{_forward_impl.1} parent=1 // pred_fallthru
      _
    // Predicated region
    $region10: #{_forward_impl.1} parent=1 // pred_check
      _
    $region11: #{_forward_impl.1} parent=1 // pred_check_branch
      %27 = sbr.rel (0) target = $region13
    $region12: #{_forward_impl.1} parent=1 // pred_region
      _
    $region13: #{_forward_impl.1} parent=1 // pred_fallthru
      _
    // Predicated region
    $region14: #{_forward_impl.1} parent=1 // pred_check
      _
    $region15: #{_forward_impl.1} parent=1 // pred_check_branch
      %29 = sbr.rel (0) target = $region17
    $region16: #{_forward_impl.1} parent=1 // pred_region
      %s31 = ssub.s32 2048, 2048
      %32 = vsyncadd [#allocation5], %s31
      %s33 = sshll.u32 [#allocation4], 4
      %s34 = int_to_ptr.vmem [resolvable:$true] %s33
      %39 = dma.hbm_to_vmem [thread:$0]  %s3, 2048, %s34, [#allocation5], 128, 128, 8
    $region17: #{_forward_impl.1} parent=1 // pred_fallthru
      _
    // Predicated region
    $region18: #{_forward_impl.1} parent=1 // pred_check
      _
    $region19: #{_forward_impl.1} parent=1 // pred_check_branch
      %41 = sbr.rel (0) target = $region21
    $region20: #{_forward_impl.1} parent=1 // pred_region
      _
    $region21: #{_forward_impl.1} parent=1 // pred_fallthru
      _
    // Predicated region
    $region22: #{_forward_impl.1} parent=1 // pred_check
      _
    $region23: #{_forward_impl.1} parent=1 // pred_check_branch
      %43 = sbr.rel (0) target = $region25
    $region24: #{_forward_impl.1} parent=1 // pred_region
      %44 = dma.done [#allocation3], 2048
    $region25: #{_forward_impl.1} parent=1 // pred_fallthru
      _
    // Predicated region
    $region26: #{_forward_impl.1} parent=1 // pred_check
      _
    $region27: #{_forward_impl.1} parent=1 // pred_check_branch
      %46 = sbr.rel (0) target = $region29
    $region28: #{_forward_impl.1} parent=1 // pred_region
      %47 = dma.done [#allocation5], 2048
    $region29: #{_forward_impl.1} parent=1 // pred_fallthru
      _
    %p48 = scmp.eq.s32.totalorder 0, 0
    // Predicated region
    $region30: #{_forward_impl.1} parent=1 // pred_check
      %p49 = pneg %p48
    $region31: #{_forward_impl.1} parent=1 // pred_check_branch
      %51 = sbr.rel (%p49) target = $region33
    $region32: #{_forward_impl.1} parent=1 // pred_region
      %v52 = vld [vmem:[%s4] sm:$0x1]
      %v54 = vlaneseq
      %v55 = vshrl.u32 %v54, 7
      %v56 = vsub.s32 0, %v55
      %v57 = vrot.slane %v52, %v56
      %59 = vst [vmem:[%s5] sm:$0xff] %v57
    $region33: #{_forward_impl.1} parent=1 // pred_fallthru
      _
    %v60 = vld [vmem:[%s0] sm:$0xff]
    %v61 = vld [vmem:[#allocation2] sm:$0xff]
    %v62 = vld [vmem:[#allocation2 + $0x8] sm:$0xff]
    %v63 = vld [vmem:[#allocation2 + $0x10] sm:$0xff]
    %v64 = vld [vmem:[#allocation2 + $0x18] sm:$0xff]
    %v65 = vld [vmem:[#allocation2 + $0x20] sm:$0xff]
    %v66 = vld [vmem:[#allocation2 + $0x28] sm:$0xff]
    %v67 = vld [vmem:[#allocation2 + $0x30] sm:$0xff]
    %v68 = vld [vmem:[#allocation2 + $0x38] sm:$0xff]
    %v69 = vld [vmem:[#allocation2 + $0x40] sm:$0xff]
    %v70 = vld [vmem:[#allocation2 + $0x48] sm:$0xff]
    %v71 = vld [vmem:[#allocation2 + $0x50] sm:$0xff]
    %v72 = vld [vmem:[#allocation2 + $0x58] sm:$0xff]
    %v73 = vld [vmem:[#allocation2 + $0x60] sm:$0xff]
    %v74 = vld [vmem:[#allocation2 + $0x68] sm:$0xff]
    %v75 = vld [vmem:[#allocation2 + $0x70] sm:$0xff]
    %v76 = vld [vmem:[#allocation2 + $0x78] sm:$0xff]
    %v77 = vld [vmem:[%s2] sm:$0x1]
    %v79 = vlaneseq
    %v80 = vshrl.u32 %v79, 7
    %v81 = vsub.s32 0, %v80
    %v82 = vrot.slane %v77, %v81
    %84 = vmatprep.subr.mxu0 0.0
    %85 = vmatpush1.msra.mxu0 %v61
    %86 = vmatprep.subr.mxu0 0.0
    %87 = vmatpush1.msra.mxu0 %v62
    %88 = vmatprep.subr.mxu0 0.0
    %89 = vmatpush1.msra.mxu0 %v63
    %90 = vmatprep.subr.mxu0 0.0
    %91 = vmatpush1.msra.mxu0 %v64
    %92 = vmatprep.subr.mxu0 0.0
    %93 = vmatpush1.msra.mxu0 %v65
    %94 = vmatprep.subr.mxu0 0.0
    %95 = vmatpush1.msra.mxu0 %v66
    %96 = vmatprep.subr.mxu0 0.0
    %97 = vmatpush1.msra.mxu0 %v67
    %98 = vmatprep.subr.mxu0 0.0
    %99 = vmatpush1.msra.mxu0 %v68
    %100 = vmatprep.subr.mxu0 0.0
    %101 = vmatpush1.msra.mxu0 %v69
    %102 = vmatprep.subr.mxu0 0.0
    %103 = vmatpush1.msra.mxu0 %v70
    %104 = vmatprep.subr.mxu0 0.0
    %105 = vmatpush1.msra.mxu0 %v71
    %106 = vmatprep.subr.mxu0 0.0
    %107 = vmatpush1.msra.mxu0 %v72
    %108 = vmatprep.subr.mxu0 0.0
    %109 = vmatpush1.msra.mxu0 %v73
    %110 = vmatprep.subr.mxu0 0.0
    %111 = vmatpush1.msra.mxu0 %v74
    %112 = vmatprep.subr.mxu0 0.0
    %113 = vmatpush1.msra.mxu0 %v75
    %114 = vmatprep.subr.mxu0 0.0
    %115 = vmatpush1.msra.mxu0 %v76
    %116 = vmatprep.subr.mxu0 0.0
    %117 = vmatpush1.msra.mxu0 0.0
    %118 = vmatprep.subr.mxu0 0.0
    %119 = vmatpush1.msra.mxu0 0.0
    %120 = vmatprep.subr.mxu0 0.0
    %121 = vmatpush1.msra.mxu0 0.0
    %122 = vmatprep.subr.mxu0 0.0
    %123 = vmatpush1.msra.mxu0 0.0
    %124 = vmatprep.subr.mxu0 0.0
    %125 = vmatpush1.msra.mxu0 0.0
    %126 = vmatprep.subr.mxu0 0.0
    %127 = vmatpush1.msra.mxu0 0.0
    %128 = vmatprep.subr.mxu0 0.0
    %129 = vmatpush1.msra.mxu0 0.0
    %130 = vmatprep.subr.mxu0 0.0
    %131 = vmatpush1.msra.mxu0 0.0
    %132 = vmatprep.subr.mxu0 0.0
    %133 = vmatpush1.msra.mxu0 0.0
    %134 = vmatprep.subr.mxu0 0.0
    %135 = vmatpush1.msra.mxu0 0.0
    %136 = vmatprep.subr.mxu0 0.0
    %137 = vmatpush1.msra.mxu0 0.0
    %138 = vmatprep.subr.mxu0 0.0
    %139 = vmatpush1.msra.mxu0 0.0
    %140 = vmatprep.subr.mxu0 0.0
    %141 = vmatpush1.msra.mxu0 0.0
    %142 = vmatprep.subr.mxu0 0.0
    %143 = vmatpush1.msra.mxu0 0.0
    %144 = vmatprep.subr.mxu0 0.0
    %145 = vmatpush1.msra.mxu0 0.0
    %146 = vmatprep.subr.mxu0 0.0
    %147 = vmatpush1.msra.mxu0 0.0
    %148 = vmatprep.mubr.f32.mxu0 0.0
    %149 = vmatmul.mubr.f32.gmra.mrb[0].mxu0 %v60
    %v150 = vpop.f32.mrb[0].mxu0
    %v151 = vadd.f32 %v82, %v150
    %v152 = vpop.f32.mrb[0].mxu0
    %153 = vdwg.mxu0
    %v154 = vmax.f32 %v151, 0.0
    %v155 = vld [vmem:[%s5] sm:$0xff]
    %v156 = vld [vmem:[#allocation4] sm:$0xff]
    %v157 = vld [vmem:[#allocation4 + $0x8] sm:$0xff]
    %v158 = vld [vmem:[#allocation4 + $0x10] sm:$0xff]
    %v159 = vld [vmem:[#allocation4 + $0x18] sm:$0xff]
    %v160 = vld [vmem:[#allocation4 + $0x20] sm:$0xff]
    %v161 = vld [vmem:[#allocation4 + $0x28] sm:$0xff]
    %v162 = vld [vmem:[#allocation4 + $0x30] sm:$0xff]
    %v163 = vld [vmem:[#allocation4 + $0x38] sm:$0xff]
    %v164 = vld [vmem:[#allocation4 + $0x40] sm:$0xff]
    %v165 = vld [vmem:[#allocation4 + $0x48] sm:$0xff]
    %v166 = vld [vmem:[#allocation4 + $0x50] sm:$0xff]
    %v167 = vld [vmem:[#allocation4 + $0x58] sm:$0xff]
    %v168 = vld [vmem:[#allocation4 + $0x60] sm:$0xff]
    %v169 = vld [vmem:[#allocation4 + $0x68] sm:$0xff]
    %v170 = vld [vmem:[#allocation4 + $0x70] sm:$0xff]
    %v171 = vld [vmem:[#allocation4 + $0x78] sm:$0xff]
    %172 = vmatprep.subr.mxu0 0.0
    %173 = vmatpush1.msra.mxu0 %v156
    %174 = vmatprep.subr.mxu0 0.0
    %175 = vmatpush1.msra.mxu0 %v157
    %176 = vmatprep.subr.mxu0 0.0
    %177 = vmatpush1.msra.mxu0 %v158
    %178 = vmatprep.subr.mxu0 0.0
    %179 = vmatpush1.msra.mxu0 %v159
    %180 = vmatprep.subr.mxu0 0.0
    %181 = vmatpush1.msra.mxu0 %v160
    %182 = vmatprep.subr.mxu0 0.0
    %183 = vmatpush1.msra.mxu0 %v161
    %184 = vmatprep.subr.mxu0 0.0
    %185 = vmatpush1.msra.mxu0 %v162
    %186 = vmatprep.subr.mxu0 0.0
    %187 = vmatpush1.msra.mxu0 %v163
    %188 = vmatprep.subr.mxu0 0.0
    %189 = vmatpush1.msra.mxu0 %v164
    %190 = vmatprep.subr.mxu0 0.0
    %191 = vmatpush1.msra.mxu0 %v165
    %192 = vmatprep.subr.mxu0 0.0
    %193 = vmatpush1.msra.mxu0 %v166
    %194 = vmatprep.subr.mxu0 0.0
    %195 = vmatpush1.msra.mxu0 %v167
    %196 = vmatprep.subr.mxu0 0.0
    %197 = vmatpush1.msra.mxu0 %v168
    %198 = vmatprep.subr.mxu0 0.0
    %199 = vmatpush1.msra.mxu0 %v169
    %200 = vmatprep.subr.mxu0 0.0
    %201 = vmatpush1.msra.mxu0 %v170
    %202 = vmatprep.subr.mxu0 0.0
    %203 = vmatpush1.msra.mxu0 %v171
    %204 = vmatprep.subr.mxu0 0.0
    %205 = vmatpush1.msra.mxu0 0.0
    %206 = vmatprep.subr.mxu0 0.0
    %207 = vmatpush1.msra.mxu0 0.0
    %208 = vmatprep.subr.mxu0 0.0
    %209 = vmatpush1.msra.mxu0 0.0
    %210 = vmatprep.subr.mxu0 0.0
    %211 = vmatpush1.msra.mxu0 0.0
    %212 = vmatprep.subr.mxu0 0.0
    %213 = vmatpush1.msra.mxu0 0.0
    %214 = vmatprep.subr.mxu0 0.0
    %215 = vmatpush1.msra.mxu0 0.0
    %216 = vmatprep.subr.mxu0 0.0
    %217 = vmatpush1.msra.mxu0 0.0
    %218 = vmatprep.subr.mxu0 0.0
    %219 = vmatpush1.msra.mxu0 0.0
    %220 = vmatprep.subr.mxu0 0.0
    %221 = vmatpush1.msra.mxu0 0.0
    %222 = vmatprep.subr.mxu0 0.0
    %223 = vmatpush1.msra.mxu0 0.0
    %224 = vmatprep.subr.mxu0 0.0
    %225 = vmatpush1.msra.mxu0 0.0
    %226 = vmatprep.subr.mxu0 0.0
    %227 = vmatpush1.msra.mxu0 0.0
    %228 = vmatprep.subr.mxu0 0.0
    %229 = vmatpush1.msra.mxu0 0.0
    %230 = vmatprep.subr.mxu0 0.0
    %231 = vmatpush1.msra.mxu0 0.0
    %232 = vmatprep.subr.mxu0 0.0
    %233 = vmatpush1.msra.mxu0 0.0
    %234 = vmatprep.subr.mxu0 0.0
    %235 = vmatpush1.msra.mxu0 0.0
    %236 = vmatprep.mubr.f32.mxu0 0.0
    %237 = vmatmul.mubr.f32.gmra.mrb[0].mxu0 %v154
    %v238 = vpop.f32.mrb[0].mxu0
    %v239 = vadd.f32 0.0, %v238
    %v240 = vpop.f32.mrb[0].mxu0
    %241 = vdwg.mxu0
    %v242 = vadd.f32 %v155, %v239
    %243 = vst [vmem:[%s5] sm:$0xff] %v242
    // Predicated region
    $region34: #{_forward_impl.1} parent=1 // pred_check
      _
    $region35: #{_forward_impl.1} parent=1 // pred_check_branch
      %245 = sbr.rel (0) target = $region37
    $region36: #{_forward_impl.1} parent=1 // pred_region
      _
    $region37: #{_forward_impl.1} parent=1 // pred_fallthru
      _
    // Predicated region
    $region38: #{_forward_impl.1} parent=1 // pred_check
      _
    $region39: #{_forward_impl.1} parent=1 // pred_check_branch
      %247 = sbr.rel (0) target = $region41
    $region40: #{_forward_impl.1} parent=1 // pred_region
      _
    $region41: #{_forward_impl.1} parent=1 // pred_fallthru
      _
    %248 = vsyncpa [#allocation3], 1
    %249 = vsyncpa [#allocation5], 1

</llo_original>
